<compile_context>
chip_gen: v7x
topology: tpu7x:2x2x1
jax: 0.10.0
libtpu: 0.0.40
codegen_flags: <defaults>
</compile_context>

<pallas_src>
import jax
import jax.numpy as jnp
import numpy as np
from jax import lax
from jax.scipy.linalg import cho_solve
from jax.experimental import pallas as pl
from jax.experimental.pallas import tpu as pltpu


# ---------------------------------------------------------------------------
# Pallas kernel
# ---------------------------------------------------------------------------
def _mtgp_kernel(params_ref, sq_ref, alpha_ref, kinv_ref, mean_ref, std_ref):
    """One grid step processes a block of TB tasks.

    params_ref: SMEM [T, 4]             (lengthscale, outputscale, const_mean, noise)
    sq_ref:     VMEM [M_pad, N_pad]     task-invariant pairwise squared distances
    alpha_ref:  VMEM [TB, 1, N_pad]     K^{-1}(y - const), lane-dense rows (f32)
    kinv_ref:   VMEM [TB, N_pad, N_pad] K^{-1} in bf16
    mean_ref:   VMEM [TB, 1, M_pad]     lane-dense outputs
    std_ref:    VMEM [TB, 1, M_pad]
    """
    tb = kinv_ref.shape[0]
    t0 = pl.program_id(0) * tb

    sq = sq_ref[...]                                        # [M_pad, N_pad] f32

    for tt in range(tb):                                    # static unroll, tb small
        t = t0 + tt
        ls = params_ref[t, 0]
        oscale = params_ref[t, 1]
        const = params_ref[t, 2]
        # params_ref[t, 3] (likelihood noise) is unused: the forward returns the
        # latent posterior variance, matching gp(x, full_covariance=False).

        # scaled RBF cross-kernel k(x*, X_train)
        k_star = oscale * jnp.exp(sq * (-0.5 / (ls * ls)))  # [M_pad, N_pad] f32

        # posterior mean: const + sum(k* ⊙ alpha)  (VPU multiply + lane reduce)
        alpha_row = alpha_ref[tt]                           # [1, N_pad]
        mean = const + jnp.sum(k_star * alpha_row, axis=-1)  # [M_pad]

        # latent posterior variance (diagonal): oscale - k* K^{-1} k*^T
        # bf16 MXU matmul, f32 accumulation.
        tmp = jnp.dot(k_star.astype(jnp.bfloat16), kinv_ref[tt],
                      preferred_element_type=jnp.float32)    # [M_pad, N_pad] f32
        quad = jnp.sum(tmp * k_star, axis=-1)                # [M_pad]
        var = jnp.maximum(oscale - quad, 1e-12)

        mean_ref[tt] = mean[None, :]                         # lane-dense [1, M_pad]
        std_ref[tt] = jnp.sqrt(var)[None, :]


# ---------------------------------------------------------------------------
# Host-side helpers
# ---------------------------------------------------------------------------
def _round_up(v, m):
    return (v + m - 1) // m * m


def _pairwise_sq(x, train_x):
    """Exact-f32 pairwise squared distances [M, N] (shared by kernel & reference)."""
    x_sq = jnp.sum(x * x, axis=-1, keepdims=True)                 # [M, 1]
    xtr_sq = jnp.sum(train_x * train_x, axis=-1)[None, :]         # [1, N]
    cross = lax.dot_general(x, train_x, (((1,), (1,)), ((), ())),
                            precision=lax.Precision.HIGHEST,
                            preferred_element_type=jnp.float32)   # [M, N]
    return jnp.maximum(x_sq + xtr_sq - 2.0 * cross, 0.0)


def _choose_task_block(T, N_pad, M_pad, budget_bytes=40 * 1024 * 1024, max_tb=8):
    """Largest divisor of T (<= max_tb) whose per-step footprint fits the budget."""
    def step_bytes(tb):
        return (2 * tb * N_pad * N_pad * 2      # double-buffered bf16 K^{-1}
                + 2 * tb * N_pad * 4            # alpha
                + M_pad * N_pad * 4             # sq (resident)
                + 4 * tb * M_pad * 4            # outputs (double-buffered)
                + 4 * M_pad * N_pad * 4)        # k_star / tmp working set
    best = 1
    for tb in range(1, min(T, max_tb) + 1):
        if T % tb == 0 and step_bytes(tb) <= budget_bytes:
            best = tb
    return best, step_bytes(best)


def multitask_gp_forward(x, train_x, params, alpha, kinv_bf16):
    """Returns (means, stds), each [M, T] float32."""
    M, _ = x.shape
    N = train_x.shape[0]
    T = params.shape[0]

    # Hoisted, task-invariant squared distances (computed once, not T times).
    sq = _pairwise_sq(x, train_x)                                  # [M, N]

    # Layout-friendly padding: M -> sublane multiple, N -> lane multiple.
    # Zero padding is exact (padded alpha / K^{-1} rows & cols are zero).
    M_pad = _round_up(M, 8)
    N_pad = _round_up(N, 128)
    sq_p = jnp.zeros((M_pad, N_pad), jnp.float32).at[:M, :N].set(sq)
    alpha_p = jnp.zeros((T, 1, N_pad), jnp.float32).at[:, 0, :N].set(alpha)
    kinv_p = jnp.zeros((T, N_pad, N_pad), jnp.bfloat16).at[:, :N, :N].set(kinv_bf16)

    TB, step_bytes = _choose_task_block(T, N_pad, M_pad)
    grid = (T // TB,)
    vmem_limit = int(min(max(2 * step_bytes, 32 * 1024 * 1024), 48 * 1024 * 1024))

    mean, std = pl.pallas_call(
        _mtgp_kernel,
        out_shape=(jax.ShapeDtypeStruct((T, 1, M_pad), jnp.float32),
                   jax.ShapeDtypeStruct((T, 1, M_pad), jnp.float32)),
        grid=grid,
        in_specs=[
            pl.BlockSpec(memory_space=pltpu.MemorySpace.SMEM),       # params table
            pl.BlockSpec((M_pad, N_pad), lambda i: (0, 0)),          # sq (shared)
            pl.BlockSpec((TB, 1, N_pad), lambda i: (i, 0, 0)),       # alpha block
            pl.BlockSpec((TB, N_pad, N_pad), lambda i: (i, 0, 0)),   # K^{-1} block
        ],
        out_specs=(
            pl.BlockSpec((TB, 1, M_pad), lambda i: (i, 0, 0)),
            pl.BlockSpec((TB, 1, M_pad), lambda i: (i, 0, 0)),
        ),
        compiler_params=pltpu.CompilerParams(
            dimension_semantics=("parallel",),
            vmem_limit_bytes=vmem_limit),
    )(params, sq_p, alpha_p, kinv_p)

    means = mean[:, 0, :M].T          # [M, T]
    stds = std[:, 0, :M].T            # [M, T]
    return means, stds


def build_multitask_gp(train_x, train_y, var):
    """Plain-JAX 'training' / parameter setup (the __init__ of MultitaskGP).

    # TODO(synk): gpytorch's fit_gpytorch_model hyperparameter optimization is
    # not replicated; hyperparameters are set deterministically instead.
    # TODO(synk): the >500-training-point random subsampling in MultitaskGP.__init__
    # is not replicated (test sizes are far below the cap).
    """
    N, _ = train_x.shape
    T = train_y.shape[1]
    assert T == var.shape[0], "variance must be provided for each output"

    lengthscales = 1.0 + 0.1 * jnp.arange(T, dtype=jnp.float32)
    outputscales = 1.5 * jnp.ones((T,), jnp.float32)
    constants = 0.1 * jnp.arange(T, dtype=jnp.float32)
    noises = jnp.asarray(var, jnp.float32)

    diff = train_x[:, None, :] - train_x[None, :, :]
    sqd = jnp.sum(diff * diff, axis=-1)                      # [N, N]
    eye = jnp.eye(N, dtype=jnp.float32)

    alphas, kinvs = [], []
    for t in range(T):
        K = (outputscales[t] * jnp.exp(-0.5 * sqd / (lengthscales[t] ** 2))
             + noises[t] * eye)
        L = jnp.linalg.cholesky(K)
        kinv_t = cho_solve((L, True), eye)
        alpha_t = cho_solve((L, True), (train_y[:, t] - constants[t])[:, None])
        alphas.append(alpha_t[:, 0])
        kinvs.append(kinv_t)

    alpha = jnp.stack(alphas).astype(jnp.float32)            # [T, N]   (lane-dense rows)
    kinv = jnp.stack(kinvs).astype(jnp.bfloat16)             # [T, N, N] bf16 (HBM-bound stream)
    params = jnp.stack([lengthscales, outputscales, constants, noises],
                       axis=1).astype(jnp.float32)           # [T, 4]
    return params, alpha, kinv


def reference_forward(x, train_x, params, alpha, kinv_bf16):
    """Pure-JAX reference of MultitaskGP.forward mirroring the kernel numerics
    (bf16-valued K^{-1} and bf16-cast k* for the quadratic form, f32 accumulate)."""
    sq = _pairwise_sq(x, train_x)
    means, stds = [], []
    for t in range(params.shape[0]):
        ls, osc, const = params[t, 0], params[t, 1], params[t, 2]
        ks = osc * jnp.exp(sq * (-0.5 / (ls * ls)))
        m = const + jnp.sum(ks * alpha[t][None, :], axis=-1)
        ks_q = ks.astype(jnp.bfloat16).astype(jnp.float32)
        kin = kinv_bf16[t].astype(jnp.float32)
        quad = jnp.sum((ks_q @ kin) * ks, axis=-1)
        v = jnp.maximum(osc - quad, 1e-12)
        means.append(m)
        stds.append(jnp.sqrt(v))
    return jnp.stack(means, axis=-1), jnp.stack(stds, axis=-1)


if __name__ == "__main__":
    key = jax.random.PRNGKey(0)
    M, N, D, T = 8, 16, 4, 3   # test points, train points, features, tasks

    k1, k2, k3 = jax.random.split(key, 3)
    train_x = jax.random.normal(k1, (N, D), jnp.float32)
    train_y = jax.random.normal(k2, (N, T), jnp.float32)
    var = jnp.array([0.01, 0.02, 0.05], jnp.float32)
    x = jax.random.normal(k3, (M, D), jnp.float32)

    params, alpha, kinv = build_multitask_gp(train_x, train_y, var)

    means, stds = multitask_gp_forward(x, train_x, params, alpha, kinv)
    jax.block_until_ready((means, stds))

    ref_means, ref_stds = reference_forward(x, train_x, params, alpha, kinv)
    assert means.shape == (M, T) and stds.shape == (M, T)
    # Tolerances reflect the bf16 K^{-1} / bf16 k* quadratic-form path
    # (f32 accumulation); the f32 mean path is checked tighter.
    np.testing.assert_allclose(np.asarray(means), np.asarray(ref_means),
                               rtol=1e-3, atol=1e-3)
    np.testing.assert_allclose(np.asarray(stds), np.asarray(ref_stds),
                               rtol=5e-3, atol=5e-3)
    print("KERNEL_OK")
</pallas_src>

<mosaic_0001>
module attributes {stable_mosaic.version = 11 : i64} {
  func.func @_mtgp_kernel(%arg0: i32, %arg1: memref<3x4xf32, #tpu.memory_space<smem>>, %arg2: memref<8x128xf32, #tpu.memory_space<vmem>>, %arg3: memref<3x1x128xf32, #tpu.memory_space<vmem>>, %arg4: memref<3x128x128xbf16, #tpu.memory_space<vmem>>, %arg5: memref<3x1x8xf32, #tpu.memory_space<vmem>>, %arg6: memref<3x1x8xf32, #tpu.memory_space<vmem>>) attributes {dimension_semantics = [#tpu.dimension_semantics<parallel>], iteration_bounds = array<i64: 1>, scalar_prefetch = 0 : i64, scratch_operands = 0 : i64, tpu.core_type = #tpu.core_type<tc>, window_params = [{transform_indices = @transform_0, window_bounds = array<i64: 3, 4>}, {pipeline_mode = #tpu.pipeline_mode<synchronous>, transform_indices = @transform_1, window_bounds = array<i64: 8, 128>}, {transform_indices = @transform_2, window_bounds = array<i64: 3, 1, 128>}, {transform_indices = @transform_3, window_bounds = array<i64: 3, 128, 128>}, {transform_indices = @transform_4, window_bounds = array<i64: 3, 1, 8>}, {transform_indices = @transform_5, window_bounds = array<i64: 3, 1, 8>}]} {
    %c3_i32 = arith.constant 3 : i32
    %0 = arith.muli %arg0, %c3_i32 : i32
    %c0 = arith.constant 0 : index
    %c0_0 = arith.constant 0 : index
    %1 = vector.load %arg2[%c0, %c0_0] : memref<8x128xf32, #tpu.memory_space<vmem>>, vector<8x128xf32>
    %c0_i32 = arith.constant 0 : i32
    %2 = arith.addi %0, %c0_i32 : i32
    %3 = arith.index_cast %2 : i32 to index
    %c0_1 = arith.constant 0 : index
    %4 = memref.load %arg1[%3, %c0_1] : memref<3x4xf32, #tpu.memory_space<smem>>
    %5 = arith.index_cast %2 : i32 to index
    %c1 = arith.constant 1 : index
    %6 = memref.load %arg1[%5, %c1] : memref<3x4xf32, #tpu.memory_space<smem>>
    %7 = arith.index_cast %2 : i32 to index
    %c2 = arith.constant 2 : index
    %8 = memref.load %arg1[%7, %c2] : memref<3x4xf32, #tpu.memory_space<smem>>
    %9 = arith.mulf %4, %4 : f32
    %cst = arith.constant -5.000000e-01 : f32
    %10 = arith.divf %cst, %9 : f32
    %11 = vector.broadcast %10 : f32 to vector<8x128xf32>
    %12 = arith.mulf %1, %11 : vector<8x128xf32>
    %13 = math.exp %12 : vector<8x128xf32>
    %14 = vector.broadcast %6 : f32 to vector<8x128xf32>
    %15 = arith.mulf %14, %13 : vector<8x128xf32>
    %c0_2 = arith.constant 0 : index
    %c0_3 = arith.constant 0 : index
    %c0_4 = arith.constant 0 : index
    %16 = vector.load %arg3[%c0_2, %c0_3, %c0_4] : memref<3x1x128xf32, #tpu.memory_space<vmem>>, vector<1x1x128xf32>
    %17 = vector.shape_cast %16 : vector<1x1x128xf32> to vector<1x128xf32>
    %18 = vector.broadcast %17 : vector<1x128xf32> to vector<8x128xf32>
    %19 = arith.mulf %15, %18 : vector<8x128xf32>
    %cst_5 = arith.constant dense<0.000000e+00> : vector<8xf32>
    %20 = vector.multi_reduction <add>, %19, %cst_5 [1] : vector<8x128xf32> to vector<8xf32>
    %21 = vector.broadcast %8 : f32 to vector<8xf32>
    %22 = arith.addf %21, %20 : vector<8xf32>
    %23 = arith.truncf %15 : vector<8x128xf32> to vector<8x128xbf16>
    %c0_6 = arith.constant 0 : index
    %c0_7 = arith.constant 0 : index
    %c0_8 = arith.constant 0 : index
    %24 = vector.load %arg4[%c0_6, %c0_7, %c0_8] : memref<3x128x128xbf16, #tpu.memory_space<vmem>>, vector<1x128x128xbf16>
    %25 = vector.shape_cast %24 : vector<1x128x128xbf16> to vector<128x128xbf16>
    %cst_9 = arith.constant dense<0.000000e+00> : vector<8x128xf32>
    %26 = tpu.matmul %23, %25, %cst_9 {dimension_numbers = #tpu.dot_dimension_numbers<[1], [0], [0], [1], [0, 0, 1, 1], [], []>} : vector<8x128xbf16>, vector<128x128xbf16>, vector<8x128xf32> -> vector<8x128xf32>
    %27 = arith.mulf %26, %15 : vector<8x128xf32>
    %cst_10 = arith.constant dense<0.000000e+00> : vector<8xf32>
    %28 = vector.multi_reduction <add>, %27, %cst_10 [1] : vector<8x128xf32> to vector<8xf32>
    %29 = vector.broadcast %6 : f32 to vector<8xf32>
    %30 = arith.subf %29, %28 : vector<8xf32>
    %cst_11 = arith.constant 9.99999996E-13 : f32
    %31 = vector.broadcast %cst_11 : f32 to vector<8xf32>
    %32 = arith.maximumf %30, %31 : vector<8xf32>
    %33 = vector.shape_cast %22 : vector<8xf32> to vector<1x8xf32>
    %c0_12 = arith.constant 0 : index
    %c0_13 = arith.constant 0 : index
    %c0_14 = arith.constant 0 : index
    %34 = vector.load %arg5[%c0_12, %c0_13, %c0_14] : memref<3x1x8xf32, #tpu.memory_space<vmem>>, vector<1x1x8xf32>
    %35 = vector.shape_cast %34 : vector<1x1x8xf32> to vector<1x8xf32>
    %36 = vector.shape_cast %33 : vector<1x8xf32> to vector<1x1x8xf32>
    tpu.vector_store %arg5[%c0_12, %c0_13, %c0_14], %36 {strides = array<i32>} : memref<3x1x8xf32, #tpu.memory_space<vmem>>, vector<1x1x8xf32>,
    %37 = math.sqrt %32 : vector<8xf32>
    %38 = vector.shape_cast %37 : vector<8xf32> to vector<1x8xf32>
    %c0_15 = arith.constant 0 : index
    %c0_16 = arith.constant 0 : index
    %c0_17 = arith.constant 0 : index
    %39 = vector.load %arg6[%c0_15, %c0_16, %c0_17] : memref<3x1x8xf32, #tpu.memory_space<vmem>>, vector<1x1x8xf32>
    %40 = vector.shape_cast %39 : vector<1x1x8xf32> to vector<1x8xf32>
    %41 = vector.shape_cast %38 : vector<1x8xf32> to vector<1x1x8xf32>
    tpu.vector_store %arg6[%c0_15, %c0_16, %c0_17], %41 {strides = array<i32>} : memref<3x1x8xf32, #tpu.memory_space<vmem>>, vector<1x1x8xf32>,
    %c1_i32 = arith.constant 1 : i32
    %42 = arith.addi %0, %c1_i32 : i32
    %43 = arith.index_cast %42 : i32 to index
    %c0_18 = arith.constant 0 : index
    %44 = memref.load %arg1[%43, %c0_18] : memref<3x4xf32, #tpu.memory_space<smem>>
    %45 = arith.index_cast %42 : i32 to index
    %c1_19 = arith.constant 1 : index
    %46 = memref.load %arg1[%45, %c1_19] : memref<3x4xf32, #tpu.memory_space<smem>>
    %47 = arith.index_cast %42 : i32 to index
    %c2_20 = arith.constant 2 : index
    %48 = memref.load %arg1[%47, %c2_20] : memref<3x4xf32, #tpu.memory_space<smem>>
    %49 = arith.mulf %44, %44 : f32
    %cst_21 = arith.constant -5.000000e-01 : f32
    %50 = arith.divf %cst_21, %49 : f32
    %51 = vector.broadcast %50 : f32 to vector<8x128xf32>
    %52 = arith.mulf %1, %51 : vector<8x128xf32>
    %53 = math.exp %52 : vector<8x128xf32>
    %54 = vector.broadcast %46 : f32 to vector<8x128xf32>
    %55 = arith.mulf %54, %53 : vector<8x128xf32>
    %c1_22 = arith.constant 1 : index
    %c0_23 = arith.constant 0 : index
    %c0_24 = arith.constant 0 : index
    %56 = vector.load %arg3[%c1_22, %c0_23, %c0_24] : memref<3x1x128xf32, #tpu.memory_space<vmem>>, vector<1x1x128xf32>
    %57 = vector.shape_cast %56 : vector<1x1x128xf32> to vector<1x128xf32>
    %58 = vector.broadcast %57 : vector<1x128xf32> to vector<8x128xf32>
    %59 = arith.mulf %55, %58 : vector<8x128xf32>
    %cst_25 = arith.constant dense<0.000000e+00> : vector<8xf32>
    %60 = vector.multi_reduction <add>, %59, %cst_25 [1] : vector<8x128xf32> to vector<8xf32>
    %61 = vector.broadcast %48 : f32 to vector<8xf32>
    %62 = arith.addf %61, %60 : vector<8xf32>
    %63 = arith.truncf %55 : vector<8x128xf32> to vector<8x128xbf16>
    %c1_26 = arith.constant 1 : index
    %c0_27 = arith.constant 0 : index
    %c0_28 = arith.constant 0 : index
    %64 = vector.load %arg4[%c1_26, %c0_27, %c0_28] : memref<3x128x128xbf16, #tpu.memory_space<vmem>>, vector<1x128x128xbf16>
    %65 = vector.shape_cast %64 : vector<1x128x128xbf16> to vector<128x128xbf16>
    %cst_29 = arith.constant dense<0.000000e+00> : vector<8x128xf32>
    %66 = tpu.matmul %63, %65, %cst_29 {dimension_numbers = #tpu.dot_dimension_numbers<[1], [0], [0], [1], [0, 0, 1, 1], [], []>} : vector<8x128xbf16>, vector<128x128xbf16>, vector<8x128xf32> -> vector<8x128xf32>
    %67 = arith.mulf %66, %55 : vector<8x128xf32>
    %cst_30 = arith.constant dense<0.000000e+00> : vector<8xf32>
    %68 = vector.multi_reduction <add>, %67, %cst_30 [1] : vector<8x128xf32> to vector<8xf32>
    %69 = vector.broadcast %46 : f32 to vector<8xf32>
    %70 = arith.subf %69, %68 : vector<8xf32>
    %cst_31 = arith.constant 9.99999996E-13 : f32
    %71 = vector.broadcast %cst_31 : f32 to vector<8xf32>
    %72 = arith.maximumf %70, %71 : vector<8xf32>
    %73 = vector.shape_cast %62 : vector<8xf32> to vector<1x8xf32>
    %c1_32 = arith.constant 1 : index
    %c0_33 = arith.constant 0 : index
    %c0_34 = arith.constant 0 : index
    %74 = vector.load %arg5[%c1_32, %c0_33, %c0_34] : memref<3x1x8xf32, #tpu.memory_space<vmem>>, vector<1x1x8xf32>
    %75 = vector.shape_cast %74 : vector<1x1x8xf32> to vector<1x8xf32>
    %76 = vector.shape_cast %73 : vector<1x8xf32> to vector<1x1x8xf32>
    tpu.vector_store %arg5[%c1_32, %c0_33, %c0_34], %76 {strides = array<i32>} : memref<3x1x8xf32, #tpu.memory_space<vmem>>, vector<1x1x8xf32>,
    %77 = math.sqrt %72 : vector<8xf32>
    %78 = vector.shape_cast %77 : vector<8xf32> to vector<1x8xf32>
    %c1_35 = arith.constant 1 : index
    %c0_36 = arith.constant 0 : index
    %c0_37 = arith.constant 0 : index
    %79 = vector.load %arg6[%c1_35, %c0_36, %c0_37] : memref<3x1x8xf32, #tpu.memory_space<vmem>>, vector<1x1x8xf32>
    %80 = vector.shape_cast %79 : vector<1x1x8xf32> to vector<1x8xf32>
    %81 = vector.shape_cast %78 : vector<1x8xf32> to vector<1x1x8xf32>
    tpu.vector_store %arg6[%c1_35, %c0_36, %c0_37], %81 {strides = array<i32>} : memref<3x1x8xf32, #tpu.memory_space<vmem>>, vector<1x1x8xf32>,
    %c2_i32 = arith.constant 2 : i32
    %82 = arith.addi %0, %c2_i32 : i32
    %83 = arith.index_cast %82 : i32 to index
    %c0_38 = arith.constant 0 : index
    %84 = memref.load %arg1[%83, %c0_38] : memref<3x4xf32, #tpu.memory_space<smem>>
    %85 = arith.index_cast %82 : i32 to index
    %c1_39 = arith.constant 1 : index
    %86 = memref.load %arg1[%85, %c1_39] : memref<3x4xf32, #tpu.memory_space<smem>>
    %87 = arith.index_cast %82 : i32 to index
    %c2_40 = arith.constant 2 : index
    %88 = memref.load %arg1[%87, %c2_40] : memref<3x4xf32, #tpu.memory_space<smem>>
    %89 = arith.mulf %84, %84 : f32
    %cst_41 = arith.constant -5.000000e-01 : f32
    %90 = arith.divf %cst_41, %89 : f32
    %91 = vector.broadcast %90 : f32 to vector<8x128xf32>
    %92 = arith.mulf %1, %91 : vector<8x128xf32>
    %93 = math.exp %92 : vector<8x128xf32>
    %94 = vector.broadcast %86 : f32 to vector<8x128xf32>
    %95 = arith.mulf %94, %93 : vector<8x128xf32>
    %c2_42 = arith.constant 2 : index
    %c0_43 = arith.constant 0 : index
    %c0_44 = arith.constant 0 : index
    %96 = vector.load %arg3[%c2_42, %c0_43, %c0_44] : memref<3x1x128xf32, #tpu.memory_space<vmem>>, vector<1x1x128xf32>
    %97 = vector.shape_cast %96 : vector<1x1x128xf32> to vector<1x128xf32>
    %98 = vector.broadcast %97 : vector<1x128xf32> to vector<8x128xf32>
    %99 = arith.mulf %95, %98 : vector<8x128xf32>
    %cst_45 = arith.constant dense<0.000000e+00> : vector<8xf32>
    %100 = vector.multi_reduction <add>, %99, %cst_45 [1] : vector<8x128xf32> to vector<8xf32>
    %101 = vector.broadcast %88 : f32 to vector<8xf32>
    %102 = arith.addf %101, %100 : vector<8xf32>
    %103 = arith.truncf %95 : vector<8x128xf32> to vector<8x128xbf16>
    %c2_46 = arith.constant 2 : index
    %c0_47 = arith.constant 0 : index
    %c0_48 = arith.constant 0 : index
    %104 = vector.load %arg4[%c2_46, %c0_47, %c0_48] : memref<3x128x128xbf16, #tpu.memory_space<vmem>>, vector<1x128x128xbf16>
    %105 = vector.shape_cast %104 : vector<1x128x128xbf16> to vector<128x128xbf16>
    %cst_49 = arith.constant dense<0.000000e+00> : vector<8x128xf32>
    %106 = tpu.matmul %103, %105, %cst_49 {dimension_numbers = #tpu.dot_dimension_numbers<[1], [0], [0], [1], [0, 0, 1, 1], [], []>} : vector<8x128xbf16>, vector<128x128xbf16>, vector<8x128xf32> -> vector<8x128xf32>
    %107 = arith.mulf %106, %95 : vector<8x128xf32>
    %cst_50 = arith.constant dense<0.000000e+00> : vector<8xf32>
    %108 = vector.multi_reduction <add>, %107, %cst_50 [1] : vector<8x128xf32> to vector<8xf32>
    %109 = vector.broadcast %86 : f32 to vector<8xf32>
    %110 = arith.subf %109, %108 : vector<8xf32>
    %cst_51 = arith.constant 9.99999996E-13 : f32
    %111 = vector.broadcast %cst_51 : f32 to vector<8xf32>
    %112 = arith.maximumf %110, %111 : vector<8xf32>
    %113 = vector.shape_cast %102 : vector<8xf32> to vector<1x8xf32>
    %c2_52 = arith.constant 2 : index
    %c0_53 = arith.constant 0 : index
    %c0_54 = arith.constant 0 : index
    %114 = vector.load %arg5[%c2_52, %c0_53, %c0_54] : memref<3x1x8xf32, #tpu.memory_space<vmem>>, vector<1x1x8xf32>
    %115 = vector.shape_cast %114 : vector<1x1x8xf32> to vector<1x8xf32>
    %116 = vector.shape_cast %113 : vector<1x8xf32> to vector<1x1x8xf32>
    tpu.vector_store %arg5[%c2_52, %c0_53, %c0_54], %116 {strides = array<i32>} : memref<3x1x8xf32, #tpu.memory_space<vmem>>, vector<1x1x8xf32>,
    %117 = math.sqrt %112 : vector<8xf32>
    %118 = vector.shape_cast %117 : vector<8xf32> to vector<1x8xf32>
    %c2_55 = arith.constant 2 : index
    %c0_56 = arith.constant 0 : index
    %c0_57 = arith.constant 0 : index
    %119 = vector.load %arg6[%c2_55, %c0_56, %c0_57] : memref<3x1x8xf32, #tpu.memory_space<vmem>>, vector<1x1x8xf32>
    %120 = vector.shape_cast %119 : vector<1x1x8xf32> to vector<1x8xf32>
    %121 = vector.shape_cast %118 : vector<1x8xf32> to vector<1x1x8xf32>
    tpu.vector_store %arg6[%c2_55, %c0_56, %c0_57], %121 {strides = array<i32>} : memref<3x1x8xf32, #tpu.memory_space<vmem>>, vector<1x1x8xf32>,
    return
  }
  func.func @transform_0(%arg0: i32) -> (i32, i32) {
    %c0_i32 = arith.constant 0 : i32
    %c0_i32_0 = arith.constant 0 : i32
    %c0_i32_1 = arith.constant 0 : i32
    return %c0_i32, %c0_i32_0 : i32, i32
  }
  func.func @transform_1(%arg0: i32) -> (i32, i32) {
    %c0_i32 = arith.constant 0 : i32
    %c0_i32_0 = arith.constant 0 : i32
    %c0_i32_1 = arith.constant 0 : i32
    return %c0_i32, %c0_i32_0 : i32, i32
  }
  func.func @transform_2(%arg0: i32) -> (i32, i32, i32) {
    %c0_i32 = arith.constant 0 : i32
    %c0_i32_0 = arith.constant 0 : i32
    %c0_i32_1 = arith.constant 0 : i32
    return %arg0, %c0_i32, %c0_i32_0 : i32, i32, i32
  }
  func.func @transform_3(%arg0: i32) -> (i32, i32, i32) {
    %c0_i32 = arith.constant 0 : i32
    %c0_i32_0 = arith.constant 0 : i32
    %c0_i32_1 = arith.constant 0 : i32
    return %arg0, %c0_i32, %c0_i32_0 : i32, i32, i32
  }
  func.func @transform_4(%arg0: i32) -> (i32, i32, i32) {
    %c0_i32 = arith.constant 0 : i32
    %c0_i32_0 = arith.constant 0 : i32
    %c0_i32_1 = arith.constant 0 : i32
    return %arg0, %c0_i32, %c0_i32_0 : i32, i32, i32
  }
  func.func @transform_5(%arg0: i32) -> (i32, i32, i32) {
    %c0_i32 = arith.constant 0 : i32
    %c0_i32_0 = arith.constant 0 : i32
    %c0_i32_1 = arith.constant 0 : i32
    return %arg0, %c0_i32, %c0_i32_0 : i32, i32, i32
  }
}

</mosaic_0001>

<llo_original>
// kernel: tpu_custom_call.1
$region0: #{tpu_custom_call.1}
  #allocation0 [shape = 'u32[]', space=smem, size = 0x4, offset = 0x4, fixed_abs, tag = 'smem constant byte address 0x4 - core index']
  #allocation1 [shape = 'u32[144,128]{1,0:T(1,128)}', space=vmem, size = 0x12000, scoped, tag = 'internal scratch']
  %s0 = inlined_call_operand.hbm [shape: f32[3,4], index: 0, kind: input, shape index: {}]
  %s1 = inlined_call_operand.hbm [shape: f32[8,128], index: 1, kind: input, shape index: {}]
  %s2 = inlined_call_operand.vmem [shape: f32[3,1,128], index: 2, kind: input, shape index: {}]
  %s3 = inlined_call_operand.hbm [shape: bf16[3,128,128], index: 3, kind: input, shape index: {}]
  %s4 = inlined_call_operand.hbm [shape: f32[3,1,8], index: 4, kind: output, shape index: {0}]
  %s5 = inlined_call_operand.hbm [shape: f32[3,1,8], index: 5, kind: output, shape index: {1}]
  %6 = xla_tuple %s4, %s5
  %s7 = sld [smem:[#allocation0]]
  $region46: #{tpu_custom_call.1} parent=0
    _
  %s9 = ssub.s32 1, %s7
  %s10 = scalar_select 0, %s9, %s7
  $region1: #{tpu_custom_call.1} parent=0
    #allocation2 [shape = 'u8[2048]{0}', space=smem, size = 0x800, scoped, tag = 'input window, operand 0, single buffered']
    #allocation3 [shape = 's32[1]{0}', space=sflag, size = 0x4, scoped, tag = 'scoped memory for tpu_custom_call.1']
    #allocation4 [shape = 's32[1]{0}', space=sflag, size = 0x4, scoped, tag = 'scoped memory for tpu_custom_call.1']
    #allocation5 [shape = 's32[1]{0}', space=sflag, size = 0x4, scoped, tag = 'scoped memory for tpu_custom_call.1']
    #allocation6 [shape = 'u8[4096]{0}', space=vmem, size = 0x1000, scoped, tag = 'input window, operand 1, single buffered']
    #allocation7 [shape = 'u8[98304]{0}', space=vmem, size = 0x18000, scoped, tag = 'input window, operand 3, single buffered']
    #allocation8 [shape = 's32[1]{0}', space=sflag, size = 0x4, scoped, tag = 'scoped memory for tpu_custom_call.1']
    #allocation9 [shape = 'u8[1536]{0}', space=vmem, size = 0x800, scoped, tag = 'output window, operand 0, single buffered']
    #allocation10 [shape = 'u8[1536]{0}', space=vmem, size = 0x800, scoped, tag = 'output window, operand 1, single buffered']
    #allocation11 [shape = 's32[1]{0}', space=sflag, size = 0x4, scoped, tag = 'scoped memory for tpu_custom_call.1']
    %11 = vsyncpa [#allocation5], 0
    %12 = vsyncpa [#allocation3], 0
    %13 = vsyncpa [#allocation8], 0
    %14 = vsyncpa [#allocation4], 0
    %15 = vsyncpa [#allocation11], 0
    // Predicated region
    $region2: #{tpu_custom_call.1} parent=1 // pred_check
      _
    $region3: #{tpu_custom_call.1} parent=1 // pred_check_branch
      %17 = sbr.rel (0) target = $region5
    $region4: #{tpu_custom_call.1} parent=1 // pred_region
      %s19 = ssub.s32 64, 64
      %20 = vsyncadd [#allocation5], %s19
      %23 = dma.hbm_to_smem %s0, 64, [#allocation2], [#allocation5]
    $region5: #{tpu_custom_call.1} parent=1 // pred_fallthru
      _
    // Predicated region
    $region6: #{tpu_custom_call.1} parent=1 // pred_check
      _
    $region7: #{tpu_custom_call.1} parent=1 // pred_check_branch
      %25 = sbr.rel (0) target = $region9
    $region8: #{tpu_custom_call.1} parent=1 // pred_region
      %s27 = ssub.s32 128, 128
      %28 = vsyncadd [#allocation3], %s27
      %s30 = sshll.u32 [#allocation6], 4
      %s31 = int_to_ptr.vmem [resolvable:$true] %s30
      %33 = dma.hbm_to_vmem [thread:$0]  %s1, 128, %s31, [#allocation3]
    $region9: #{tpu_custom_call.1} parent=1 // pred_fallthru
      _
    // Predicated region
    $region10: #{tpu_custom_call.1} parent=1 // pred_check
      _
    $region11: #{tpu_custom_call.1} parent=1 // pred_check_branch
      %35 = sbr.rel (0) target = $region13
    $region12: #{tpu_custom_call.1} parent=1 // pred_region
      _
    $region13: #{tpu_custom_call.1} parent=1 // pred_fallthru
      _
    // Predicated region
    $region14: #{tpu_custom_call.1} parent=1 // pred_check
      _
    $region15: #{tpu_custom_call.1} parent=1 // pred_check_branch
      %37 = sbr.rel (0) target = $region17
    $region16: #{tpu_custom_call.1} parent=1 // pred_region
      %s39 = ssub.s32 3072, 3072
      %40 = vsyncadd [#allocation8], %s39
      %s41 = sshll.u32 [#allocation7], 4
      %s42 = int_to_ptr.vmem [resolvable:$true] %s41
      %47 = dma.hbm_to_vmem [thread:$0]  %s3, 3072, %s42, [#allocation8], 64, 64, 4
    $region17: #{tpu_custom_call.1} parent=1 // pred_fallthru
      _
    // Predicated region
    $region18: #{tpu_custom_call.1} parent=1 // pred_check
      _
    $region19: #{tpu_custom_call.1} parent=1 // pred_check_branch
      %49 = sbr.rel (0) target = $region21
    $region20: #{tpu_custom_call.1} parent=1 // pred_region
      %50 = dma.done [#allocation5], 64
    $region21: #{tpu_custom_call.1} parent=1 // pred_fallthru
      _
    // Predicated region
    $region22: #{tpu_custom_call.1} parent=1 // pred_check
      _
    $region23: #{tpu_custom_call.1} parent=1 // pred_check_branch
      %52 = sbr.rel (0) target = $region25
    $region24: #{tpu_custom_call.1} parent=1 // pred_region
      %53 = dma.done [#allocation3], 128
    $region25: #{tpu_custom_call.1} parent=1 // pred_fallthru
      _
    // Predicated region
    $region26: #{tpu_custom_call.1} parent=1 // pred_check
      _
    $region27: #{tpu_custom_call.1} parent=1 // pred_check_branch
      %55 = sbr.rel (0) target = $region29
    $region28: #{tpu_custom_call.1} parent=1 // pred_region
      %56 = dma.done [#allocation8], 3072
    $region29: #{tpu_custom_call.1} parent=1 // pred_fallthru
      _
    %57 = sfence
    %s59 = smul.u32 0, 3
    %v60 = vld [vmem:[#allocation6] sm:$0xff]
    %s61 = smul.u32 %s59, 128
    %s62 = sld [smem:[#allocation2 + %s61]]
    %s63 = sadd.s32 %s61, 1
    %s64 = sld [smem:[#allocation2 + %s63]]
    %s65 = sadd.s32 %s61, 2
    %s66 = sld [smem:[#allocation2 + %s65]]
    %s67 = smul.f32 %s62, %s62
    %v68 = vstv %s67
    %v69 = vrcp.pop %v68
    %s70 = vtos %v69
    %s71 = smul.f32 -0.5, %s70
    %v72 = vstv %s71
    %v73 = vmul.f32 %v60, %v72
    %v74 = vmul.f32 %v73, 1.442695
    %v75 = vpow.pop %v74
    %v76 = vstv %s64
    %v77 = vmul.f32 %v76, %v75
    %v78 = vld [vmem:[%s2] sm:$0x1]
    %v80 = vlaneseq
    %v81 = vshrl.u32 %v80, 7
    %v82 = vsub.s32 0, %v81
    %v83 = vrot.slane %v78, %v82
    %v85 = vmul.f32 %v77, %v83
    %86 = vadd.xlane.f32.xlu0 %v85
    %v87 = vpop.xlane.xlu0 %86
    %v88 = vstv %s66
    %v89 = vadd.f32 %v88, %v87
    %v90 = vpack.c.bf16 %v77, %v77
    %v91 = vld [vmem:[#allocation7] sm:$0xf]
    %v92 = vld [vmem:[#allocation7 + $0x4] sm:$0xf]
    %v93 = vld [vmem:[#allocation7 + $0x8] sm:$0xf]
    %v94 = vld [vmem:[#allocation7 + $0xc] sm:$0xf]
    %v95 = vld [vmem:[#allocation7 + $0x10] sm:$0xf]
    %v96 = vld [vmem:[#allocation7 + $0x14] sm:$0xf]
    %v97 = vld [vmem:[#allocation7 + $0x18] sm:$0xf]
    %v98 = vld [vmem:[#allocation7 + $0x1c] sm:$0xf]
    %v99 = vld [vmem:[#allocation7 + $0x20] sm:$0xf]
    %v100 = vld [vmem:[#allocation7 + $0x24] sm:$0xf]
    %v101 = vld [vmem:[#allocation7 + $0x28] sm:$0xf]
    %v102 = vld [vmem:[#allocation7 + $0x2c] sm:$0xf]
    %v103 = vld [vmem:[#allocation7 + $0x30] sm:$0xf]
    %v104 = vld [vmem:[#allocation7 + $0x34] sm:$0xf]
    %v105 = vld [vmem:[#allocation7 + $0x38] sm:$0xf]
    %v106 = vld [vmem:[#allocation7 + $0x3c] sm:$0xf]
    %v123 = vunpack.c.l.b16 %v91
    %v124 = vunpack.c.l.b16 %v92
    %v125 = vunpack.c.l.b16 %v93
    %v126 = vunpack.c.l.b16 %v94
    %v127 = vunpack.c.l.b16 %v95
    %v128 = vunpack.c.l.b16 %v96
    %v129 = vunpack.c.l.b16 %v97
    %v130 = vunpack.c.l.b16 %v98
    %v131 = vunpack.c.l.b16 %v99
    %v132 = vunpack.c.l.b16 %v100
    %v133 = vunpack.c.l.b16 %v101
    %v134 = vunpack.c.l.b16 %v102
    %v135 = vunpack.c.l.b16 %v103
    %v136 = vunpack.c.l.b16 %v104
    %v137 = vunpack.c.l.b16 %v105
    %v138 = vunpack.c.l.b16 %v106
    %v139 = vpack.c.b16 %v124, %v123
    %v140 = vpack.c.b16 %v126, %v125
    %v141 = vpack.c.b16 %v128, %v127
    %v142 = vpack.c.b16 %v130, %v129
    %v143 = vpack.c.b16 %v132, %v131
    %v144 = vpack.c.b16 %v134, %v133
    %v145 = vpack.c.b16 %v136, %v135
    %v146 = vpack.c.b16 %v138, %v137
    %155 = vmatprep.subr.bf16.mxu0 0
    %156 = vmatpush1.bf16.msra.mxu0 %v139
    %157 = vmatprep.subr.bf16.mxu0 0
    %158 = vmatpush1.bf16.msra.mxu0 %v140
    %159 = vmatprep.subr.bf16.mxu0 0
    %160 = vmatpush1.bf16.msra.mxu0 %v141
    %161 = vmatprep.subr.bf16.mxu0 0
    %162 = vmatpush1.bf16.msra.mxu0 %v142
    %163 = vmatprep.subr.bf16.mxu0 0
    %164 = vmatpush1.bf16.msra.mxu0 %v143
    %165 = vmatprep.subr.bf16.mxu0 0
    %166 = vmatpush1.bf16.msra.mxu0 %v144
    %167 = vmatprep.subr.bf16.mxu0 0
    %168 = vmatpush1.bf16.msra.mxu0 %v145
    %169 = vmatprep.subr.bf16.mxu0 0
    %170 = vmatpush1.bf16.msra.mxu0 %v146
    %171 = vmatprep.subr.bf16.mxu0 0
    %172 = vmatpush1.bf16.msra.mxu0 0
    %173 = vmatprep.subr.bf16.mxu0 0
    %174 = vmatpush1.bf16.msra.mxu0 0
    %175 = vmatprep.subr.bf16.mxu0 0
    %176 = vmatpush1.bf16.msra.mxu0 0
    %177 = vmatprep.subr.bf16.mxu0 0
    %178 = vmatpush1.bf16.msra.mxu0 0
    %179 = vmatprep.subr.bf16.mxu0 0
    %180 = vmatpush1.bf16.msra.mxu0 0
    %181 = vmatprep.subr.bf16.mxu0 0
    %182 = vmatpush1.bf16.msra.mxu0 0
    %183 = vmatprep.subr.bf16.mxu0 0
    %184 = vmatpush1.bf16.msra.mxu0 0
    %185 = vmatprep.subr.bf16.mxu0 0
    %186 = vmatpush1.bf16.msra.mxu0 0
    %187 = vmatprep.mubr.bf16.mxu0 0
    %188 = vmatmul.mubr.bf16.gmra.mrb[0].mxu0 %v90
    %v189 = vpop.f32.mrb[0].mxu0
    %v190 = vadd.f32 0.0, %v189
    %v191 = vpop.f32.mrb[0].mxu0
    %v192 = vpop.f32.mrb[0].mxu0
    %v193 = vpop.f32.mrb[0].mxu0
    %194 = vdwg.mxu0
    %v195 = vmul.f32 %v190, %v77
    %196 = vadd.xlane.f32.xlu0 %v195
    %v197 = vpop.xlane.xlu0 %196
    %v198 = vsub.f32 %v76, %v197
    %v199 = vmax.f32 %v198, 1e-12
    %v201 = vlaneseq
    %v202 = vand.u32 %v201, 127
    %v203 = vlaneseq
    %v204 = vshrl.u32 %v203, 7
    %v205 = vsub.s32 %v202, %v204
    %v206 = vrot.slane %v89, %v205
    %vm208 = vcmask 57344
    %209 = vst.msk [vmem:[#allocation9] sm:$0x1] %vm208, %v206
    %v210 = vrsqrt.pop %v199
    %v211 = vmul.f32 %v199, %v210
    %vm212 = vcmp.eq.f32.partialorder %v199, inf
    %v213 = vsel %vm212, %v199, %v211
    %vm214 = vcmp.eq.f32.partialorder %v199, 0.0
    %v215 = vand.u32 %v199, 2147483648
    %v216 = vsel %vm214, %v215, %v213
    %v218 = vlaneseq
    %v219 = vshrl.u32 %v218, 7
    %v220 = vsub.s32 %v202, %v219
    %v221 = vrot.slane %v216, %v220
    %223 = vst.msk [vmem:[#allocation10] sm:$0x1] %vm208, %v221
    %s224 = sadd.s32 %s59, 1
    %s225 = smul.u32 %s224, 128
    %s226 = sld [smem:[#allocation2 + %s225]]
    %s227 = sadd.s32 %s225, 1
    %s228 = sld [smem:[#allocation2 + %s227]]
    %s229 = sadd.s32 %s225, 2
    %s230 = sld [smem:[#allocation2 + %s229]]
    %s231 = smul.f32 %s226, %s226
    %v232 = vstv %s231
    %v233 = vrcp.pop %v232
    %s234 = vtos %v233
    %s235 = smul.f32 -0.5, %s234
    %v236 = vstv %s235
    %v237 = vmul.f32 %v60, %v236
    %v238 = vmul.f32 %v237, 1.442695
    %v239 = vpow.pop %v238
    %v240 = vstv %s228
    %v241 = vmul.f32 %v240, %v239
    %s242 = scalar_lea.vmem %s2, 1
    %v243 = vld [vmem:[%s242] sm:$0x1]
    %v245 = vlaneseq
    %v246 = vshrl.u32 %v245, 7
    %v247 = vsub.s32 0, %v246
    %v248 = vrot.slane %v243, %v247
    %v250 = vmul.f32 %v241, %v248
    %251 = vadd.xlane.f32.xlu0 %v250
    %v252 = vpop.xlane.xlu0 %251
    %v253 = vstv %s230
    %v254 = vadd.f32 %v253, %v252
    %v255 = vpack.c.bf16 %v241, %v241
    %s256 = scalar_lea.vmem [#allocation7], 64
    %v257 = vld [vmem:[%s256] sm:$0xf]
    %v258 = vld [vmem:[%s256 + $0x4] sm:$0xf]
    %v259 = vld [vmem:[%s256 + $0x8] sm:$0xf]
    %v260 = vld [vmem:[%s256 + $0xc] sm:$0xf]
    %v261 = vld [vmem:[%s256 + $0x10] sm:$0xf]
    %v262 = vld [vmem:[%s256 + $0x14] sm:$0xf]
    %v263 = vld [vmem:[%s256 + $0x18] sm:$0xf]
    %v264 = vld [vmem:[%s256 + $0x1c] sm:$0xf]
    %v265 = vld [vmem:[%s256 + $0x20] sm:$0xf]
    %v266 = vld [vmem:[%s256 + $0x24] sm:$0xf]
    %v267 = vld [vmem:[%s256 + $0x28] sm:$0xf]
    %v268 = vld [vmem:[%s256 + $0x2c] sm:$0xf]
    %v269 = vld [vmem:[%s256 + $0x30] sm:$0xf]
    %v270 = vld [vmem:[%s256 + $0x34] sm:$0xf]
    %v271 = vld [vmem:[%s256 + $0x38] sm:$0xf]
    %v272 = vld [vmem:[%s256 + $0x3c] sm:$0xf]
    %v289 = vunpack.c.l.b16 %v257
    %v290 = vunpack.c.l.b16 %v258
    %v291 = vunpack.c.l.b16 %v259
    %v292 = vunpack.c.l.b16 %v260
    %v293 = vunpack.c.l.b16 %v261
    %v294 = vunpack.c.l.b16 %v262
    %v295 = vunpack.c.l.b16 %v263
    %v296 = vunpack.c.l.b16 %v264
    %v297 = vunpack.c.l.b16 %v265
    %v298 = vunpack.c.l.b16 %v266
    %v299 = vunpack.c.l.b16 %v267
    %v300 = vunpack.c.l.b16 %v268
    %v301 = vunpack.c.l.b16 %v269
    %v302 = vunpack.c.l.b16 %v270
    %v303 = vunpack.c.l.b16 %v271
    %v304 = vunpack.c.l.b16 %v272
    %v305 = vpack.c.b16 %v290, %v289
    %v306 = vpack.c.b16 %v292, %v291
    %v307 = vpack.c.b16 %v294, %v293
    %v308 = vpack.c.b16 %v296, %v295
    %v309 = vpack.c.b16 %v298, %v297
    %v310 = vpack.c.b16 %v300, %v299
    %v311 = vpack.c.b16 %v302, %v301
    %v312 = vpack.c.b16 %v304, %v303
    %321 = vmatprep.subr.bf16.mxu0 0
    %322 = vmatpush1.bf16.msra.mxu0 %v305
    %323 = vmatprep.subr.bf16.mxu0 0
    %324 = vmatpush1.bf16.msra.mxu0 %v306
    %325 = vmatprep.subr.bf16.mxu0 0
    %326 = vmatpush1.bf16.msra.mxu0 %v307
    %327 = vmatprep.subr.bf16.mxu0 0
    %328 = vmatpush1.bf16.msra.mxu0 %v308
    %329 = vmatprep.subr.bf16.mxu0 0
    %330 = vmatpush1.bf16.msra.mxu0 %v309
    %331 = vmatprep.subr.bf16.mxu0 0
    %332 = vmatpush1.bf16.msra.mxu0 %v310
    %333 = vmatprep.subr.bf16.mxu0 0
    %334 = vmatpush1.bf16.msra.mxu0 %v311
    %335 = vmatprep.subr.bf16.mxu0 0
    %336 = vmatpush1.bf16.msra.mxu0 %v312
    %337 = vmatprep.subr.bf16.mxu0 0
    %338 = vmatpush1.bf16.msra.mxu0 0
    %339 = vmatprep.subr.bf16.mxu0 0
    %340 = vmatpush1.bf16.msra.mxu0 0
    %341 = vmatprep.subr.bf16.mxu0 0
    %342 = vmatpush1.bf16.msra.mxu0 0
    %343 = vmatprep.subr.bf16.mxu0 0
    %344 = vmatpush1.bf16.msra.mxu0 0
    %345 = vmatprep.subr.bf16.mxu0 0
    %346 = vmatpush1.bf16.msra.mxu0 0
    %347 = vmatprep.subr.bf16.mxu0 0
    %348 = vmatpush1.bf16.msra.mxu0 0
    %349 = vmatprep.subr.bf16.mxu0 0
    %350 = vmatpush1.bf16.msra.mxu0 0
    %351 = vmatprep.subr.bf16.mxu0 0
    %352 = vmatpush1.bf16.msra.mxu0 0
    %353 = vmatprep.mubr.bf16.mxu0 0
    %354 = vmatmul.mubr.bf16.gmra.mrb[0].mxu0 %v255
    %v355 = vpop.f32.mrb[0].mxu0
    %v356 = vadd.f32 0.0, %v355
    %v357 = vpop.f32.mrb[0].mxu0
    %v358 = vpop.f32.mrb[0].mxu0
    %v359 = vpop.f32.mrb[0].mxu0
    %360 = vdwg.mxu0
    %v361 = vmul.f32 %v356, %v241
    %362 = vadd.xlane.f32.xlu0 %v361
    %v363 = vpop.xlane.xlu0 %362
    %v364 = vsub.f32 %v240, %v363
    %v365 = vmax.f32 %v364, 1e-12
    %v367 = vlaneseq
    %v368 = vshrl.u32 %v367, 7
    %v369 = vsub.s32 %v202, %v368
    %v370 = vrot.slane %v254, %v369
    %s372 = scalar_lea.vmem [#allocation9], 1
    %373 = vst.msk [vmem:[%s372] sm:$0x1] %vm208, %v370
    %v374 = vrsqrt.pop %v365
    %v375 = vmul.f32 %v365, %v374
    %vm376 = vcmp.eq.f32.partialorder %v365, inf
    %v377 = vsel %vm376, %v365, %v375
    %vm378 = vcmp.eq.f32.partialorder %v365, 0.0
    %v379 = vand.u32 %v365, 2147483648
    %v380 = vsel %vm378, %v379, %v377
    %v382 = vlaneseq
    %v383 = vshrl.u32 %v382, 7
    %v384 = vsub.s32 %v202, %v383
    %v385 = vrot.slane %v380, %v384
    %s387 = scalar_lea.vmem [#allocation10], 1
    %388 = vst.msk [vmem:[%s387] sm:$0x1] %vm208, %v385
    %s389 = sadd.s32 %s59, 2
    %s390 = smul.u32 %s389, 128
    %s391 = sld [smem:[#allocation2 + %s390]]
    %s392 = sadd.s32 %s390, 1
    %s393 = sld [smem:[#allocation2 + %s392]]
    %s394 = sadd.s32 %s390, 2
    %s395 = sld [smem:[#allocation2 + %s394]]
    %s396 = smul.f32 %s391, %s391
    %v397 = vstv %s396
    %v398 = vrcp.pop %v397
    %s399 = vtos %v398
    %s400 = smul.f32 -0.5, %s399
    %v401 = vstv %s400
    %v402 = vmul.f32 %v60, %v401
    %v403 = vmul.f32 %v402, 1.442695
    %v404 = vpow.pop %v403
    %v405 = vstv %s393
    %v406 = vmul.f32 %v405, %v404
    %s407 = scalar_lea.vmem %s2, 2
    %v408 = vld [vmem:[%s407] sm:$0x1]
    %v410 = vlaneseq
    %v411 = vshrl.u32 %v410, 7
    %v412 = vsub.s32 0, %v411
    %v413 = vrot.slane %v408, %v412
    %v415 = vmul.f32 %v406, %v413
    %416 = vadd.xlane.f32.xlu0 %v415
    %v417 = vpop.xlane.xlu0 %416
    %v418 = vstv %s395
    %v419 = vadd.f32 %v418, %v417
    %v420 = vpack.c.bf16 %v406, %v406
    %s421 = scalar_lea.vmem [#allocation7], 128
    %v422 = vld [vmem:[%s421] sm:$0xf]
    %v423 = vld [vmem:[%s421 + $0x4] sm:$0xf]
    %v424 = vld [vmem:[%s421 + $0x8] sm:$0xf]
    %v425 = vld [vmem:[%s421 + $0xc] sm:$0xf]
    %v426 = vld [vmem:[%s421 + $0x10] sm:$0xf]
    %v427 = vld [vmem:[%s421 + $0x14] sm:$0xf]
    %v428 = vld [vmem:[%s421 + $0x18] sm:$0xf]
    %v429 = vld [vmem:[%s421 + $0x1c] sm:$0xf]
    %v430 = vld [vmem:[%s421 + $0x20] sm:$0xf]
    %v431 = vld [vmem:[%s421 + $0x24] sm:$0xf]
    %v432 = vld [vmem:[%s421 + $0x28] sm:$0xf]
    %v433 = vld [vmem:[%s421 + $0x2c] sm:$0xf]
    %v434 = vld [vmem:[%s421 + $0x30] sm:$0xf]
    %v435 = vld [vmem:[%s421 + $0x34] sm:$0xf]
    %v436 = vld [vmem:[%s421 + $0x38] sm:$0xf]
    %v437 = vld [vmem:[%s421 + $0x3c] sm:$0xf]
    %v454 = vunpack.c.l.b16 %v422
    %v455 = vunpack.c.l.b16 %v423
    %v456 = vunpack.c.l.b16 %v424
    %v457 = vunpack.c.l.b16 %v425
    %v458 = vunpack.c.l.b16 %v426
    %v459 = vunpack.c.l.b16 %v427
    %v460 = vunpack.c.l.b16 %v428
    %v461 = vunpack.c.l.b16 %v429
    %v462 = vunpack.c.l.b16 %v430
    %v463 = vunpack.c.l.b16 %v431
    %v464 = vunpack.c.l.b16 %v432
    %v465 = vunpack.c.l.b16 %v433
    %v466 = vunpack.c.l.b16 %v434
    %v467 = vunpack.c.l.b16 %v435
    %v468 = vunpack.c.l.b16 %v436
    %v469 = vunpack.c.l.b16 %v437
    %v470 = vpack.c.b16 %v455, %v454
    %v471 = vpack.c.b16 %v457, %v456
    %v472 = vpack.c.b16 %v459, %v458
    %v473 = vpack.c.b16 %v461, %v460
    %v474 = vpack.c.b16 %v463, %v462
    %v475 = vpack.c.b16 %v465, %v464
    %v476 = vpack.c.b16 %v467, %v466
    %v477 = vpack.c.b16 %v469, %v468
    %486 = vmatprep.subr.bf16.mxu0 0
    %487 = vmatpush1.bf16.msra.mxu0 %v470
    %488 = vmatprep.subr.bf16.mxu0 0
    %489 = vmatpush1.bf16.msra.mxu0 %v471
    %490 = vmatprep.subr.bf16.mxu0 0
    %491 = vmatpush1.bf16.msra.mxu0 %v472
    %492 = vmatprep.subr.bf16.mxu0 0
    %493 = vmatpush1.bf16.msra.mxu0 %v473
    %494 = vmatprep.subr.bf16.mxu0 0
    %495 = vmatpush1.bf16.msra.mxu0 %v474
    %496 = vmatprep.subr.bf16.mxu0 0
    %497 = vmatpush1.bf16.msra.mxu0 %v475
    %498 = vmatprep.subr.bf16.mxu0 0
    %499 = vmatpush1.bf16.msra.mxu0 %v476
    %500 = vmatprep.subr.bf16.mxu0 0
    %501 = vmatpush1.bf16.msra.mxu0 %v477
    %502 = vmatprep.subr.bf16.mxu0 0
    %503 = vmatpush1.bf16.msra.mxu0 0
    %504 = vmatprep.subr.bf16.mxu0 0
    %505 = vmatpush1.bf16.msra.mxu0 0
    %506 = vmatprep.subr.bf16.mxu0 0
    %507 = vmatpush1.bf16.msra.mxu0 0
    %508 = vmatprep.subr.bf16.mxu0 0
    %509 = vmatpush1.bf16.msra.mxu0 0
    %510 = vmatprep.subr.bf16.mxu0 0
    %511 = vmatpush1.bf16.msra.mxu0 0
    %512 = vmatprep.subr.bf16.mxu0 0
    %513 = vmatpush1.bf16.msra.mxu0 0
    %514 = vmatprep.subr.bf16.mxu0 0
    %515 = vmatpush1.bf16.msra.mxu0 0
    %516 = vmatprep.subr.bf16.mxu0 0
    %517 = vmatpush1.bf16.msra.mxu0 0
    %518 = vmatprep.mubr.bf16.mxu0 0
    %519 = vmatmul.mubr.bf16.gmra.mrb[0].mxu0 %v420
    %v520 = vpop.f32.mrb[0].mxu0
    %v521 = vadd.f32 0.0, %v520
    %v522 = vpop.f32.mrb[0].mxu0
    %v523 = vpop.f32.mrb[0].mxu0
    %v524 = vpop.f32.mrb[0].mxu0
    %525 = vdwg.mxu0
    %v526 = vmul.f32 %v521, %v406
    %527 = vadd.xlane.f32.xlu0 %v526
    %v528 = vpop.xlane.xlu0 %527
    %v529 = vsub.f32 %v405, %v528
    %v530 = vmax.f32 %v529, 1e-12
    %v532 = vlaneseq
    %v533 = vshrl.u32 %v532, 7
    %v534 = vsub.s32 %v202, %v533
    %v535 = vrot.slane %v419, %v534
    %s537 = scalar_lea.vmem [#allocation9], 2
    %538 = vst.msk [vmem:[%s537] sm:$0x1] %vm208, %v535
    %v539 = vrsqrt.pop %v530
    %v540 = vmul.f32 %v530, %v539
    %vm541 = vcmp.eq.f32.partialorder %v530, inf
    %v542 = vsel %vm541, %v530, %v540
    %vm543 = vcmp.eq.f32.partialorder %v530, 0.0
    %v544 = vand.u32 %v530, 2147483648
    %v545 = vsel %vm543, %v544, %v542
    %v547 = vlaneseq
    %v548 = vshrl.u32 %v547, 7
    %v549 = vsub.s32 %v202, %v548
    %v550 = vrot.slane %v545, %v549
    %s552 = scalar_lea.vmem [#allocation10], 2
    %553 = vst.msk [vmem:[%s552] sm:$0x1] %vm208, %v550
    // Predicated region
    $region30: #{tpu_custom_call.1} parent=1 // pred_check
      _
    $region31: #{tpu_custom_call.1} parent=1 // pred_check_branch
      %555 = sbr.rel (0) target = $region33
    $region32: #{tpu_custom_call.1} parent=1 // pred_region
      %s557 = ssub.s32 48, 48
      %558 = vsyncadd [#allocation4], %s557
      %s559 = sshll.u32 [#allocation9], 4
      %s560 = int_to_ptr.vmem [resolvable:$true] %s559
      %565 = dma.vmem_to_hbm [thread:$0]  %s560, 48, %s4, [#allocation4], 16, 16, 1
    $region33: #{tpu_custom_call.1} parent=1 // pred_fallthru
      _
    // Predicated region
    $region34: #{tpu_custom_call.1} parent=1 // pred_check
      _
    $region35: #{tpu_custom_call.1} parent=1 // pred_check_branch
      %567 = sbr.rel (0) target = $region37
    $region36: #{tpu_custom_call.1} parent=1 // pred_region
      %s569 = ssub.s32 48, 48
      %570 = vsyncadd [#allocation11], %s569
      %s571 = sshll.u32 [#allocation10], 4
      %s572 = int_to_ptr.vmem [resolvable:$true] %s571
      %577 = dma.vmem_to_hbm [thread:$0]  %s572, 48, %s5, [#allocation11], 16, 16, 1
    $region37: #{tpu_custom_call.1} parent=1 // pred_fallthru
      _
    // Predicated region
    $region38: #{tpu_custom_call.1} parent=1 // pred_check
      _
    $region39: #{tpu_custom_call.1} parent=1 // pred_check_branch
      %579 = sbr.rel (0) target = $region41
    $region40: #{tpu_custom_call.1} parent=1 // pred_region
      %580 = dma.done [#allocation4], 48
    $region41: #{tpu_custom_call.1} parent=1 // pred_fallthru
      _
    // Predicated region
    $region42: #{tpu_custom_call.1} parent=1 // pred_check
      _
    $region43: #{tpu_custom_call.1} parent=1 // pred_check_branch
      %582 = sbr.rel (0) target = $region45
    $region44: #{tpu_custom_call.1} parent=1 // pred_region
      %583 = dma.done [#allocation11], 48
    $region45: #{tpu_custom_call.1} parent=1 // pred_fallthru
      _
    %584 = vsyncpa [#allocation3], 1
    %585 = vsyncpa [#allocation8], 1
    %586 = vsyncpa [#allocation4], 1
    %587 = vsyncpa [#allocation11], 1
    %588 = vsyncpa [#allocation5], 1

</llo_original>
